<compile_context>
chip_gen: v6e
topology: v6e:2x2x1
jax: 0.10.0
libtpu: 0.0.40
codegen_flags: <defaults>
</compile_context>

<pallas_src>
import jax
import jax.numpy as jnp
from jax.experimental import pallas as pl
from jax.experimental.pallas import tpu as pltpu


def _shift_right_cols(g):
    """h[..., j] = g[..., j-1] for j >= 1, h[..., 0] = 0.   g: (B, T, W) f32."""
    B, T, W = g.shape
    if W == 1:
        return jnp.zeros_like(g)
    if W % 128 == 0:
        # Lane rotate on the XLU (free slot) + mask, instead of an off-by-one slice.
        rolled = pltpu.roll(g, 1, axis=2)
        lane = jax.lax.broadcasted_iota(jnp.int32, (B, T, W), 2)
        return jnp.where(lane == 0, 0.0, rolled)
    zero_col = jnp.zeros((B, T, 1), g.dtype)
    return jnp.concatenate([zero_col, g[:, :, : W - 1]], axis=2)


def _shift_down_rows(g, top):
    """h[:, r] = g[:, r-1] for r >= 1, h[:, 0] = top.   g: (B,T,W), top: (B,1,W)."""
    B, T, W = g.shape
    if T == 1:
        return top
    if T % 8 == 0 and W % 128 == 0:
        rolled = pltpu.roll(g, 1, axis=1)
        row = jax.lax.broadcasted_iota(jnp.int32, (B, T, W), 1)
        return jnp.where(row == 0, top, rolled)
    return jnp.concatenate([top, g[:, : T - 1, :]], axis=1)


def r_smooth_kernel(x_ref, o_ref, acc_ref, carry_ref):
    ht = pl.program_id(1)
    n_ht = pl.num_programs(1)

    @pl.when(ht == 0)
    def _init():
        acc_ref[...] = jnp.zeros_like(acc_ref)
        carry_ref[...] = jnp.zeros_like(carry_ref)   # virtual zero row above row 0

    # Load in native dtype, accumulate in f32.
    x = x_ref[...].astype(jnp.float32)                            # (B, 3, T, W)
    gray = 0.299 * x[:, 0] + 0.587 * x[:, 1] + 0.114 * x[:, 2]    # (B, T, W)
    B, T, W = gray.shape

    lane = jax.lax.broadcasted_iota(jnp.int32, (B, T, W), 2)
    row = jax.lax.broadcasted_iota(jnp.int32, (B, T, W), 1)
    a_gray = jnp.abs(gray)

    # x-direction: diff against the column to the left (zero outside the image)
    # plus the folded right-edge boundary term |G[:, W-1]|.
    gx = jnp.abs(gray - _shift_right_cols(gray)) \
        + jnp.where(lane == W - 1, a_gray, 0.0)

    # y-direction: diff against the row above.  Row 0 of this tile uses the carried
    # last row of the previous H tile (zeros for the first tile == top boundary).
    # The bottom boundary |G[H-1, :]| is folded in on the last H tile.
    is_last_h = ht == n_ht - 1
    gy = jnp.abs(gray - _shift_down_rows(gray, carry_ref[...]))
    gy = gy + jnp.where(jnp.logical_and(is_last_h, row == T - 1), a_gray, 0.0)

    carry_ref[...] = gray[:, T - 1 : T, :]            # last gray row -> next H tile

    # Elementwise f32 accumulation; no cross-lane/sublane reduction per step.
    acc_ref[...] += jnp.sum(gx + gy, axis=0)

    @pl.when(is_last_h)
    def _finish():
        # One reduction per batch tile; partial sums combined in the wrapper.
        o_ref[...] = jnp.sum(acc_ref[...], keepdims=True).reshape(1, 1, 1)


def r_smooth_loss(input_R, *, target_block_bytes=2 * 1024 * 1024):
    """input_R: (N, 3, H, W) float array (any float dtype) -> scalar f32 loss."""
    x = input_R                                       # keep native dtype (no HBM upcast)
    N, C, H, W = x.shape
    assert C == 3, "R_Smooth_Loss expects 3 input channels (RGB)."
    itemsize = x.dtype.itemsize
    bytes_per_image = 3 * H * W * itemsize

    if bytes_per_image <= target_block_bytes:
        # Small images: batch several per grid step, full H per block.
        tile_h = H
        b_tile = int(min(N, max(1, target_block_bytes // max(bytes_per_image, 1)), 256))
    else:
        # Large images: one image per step, tile along H (multiple of 8 sublanes).
        b_tile = 1
        rows = target_block_bytes // max(3 * W * itemsize, 1)
        rows = max(8, (rows // 8) * 8)
        tile_h = H if rows >= H else int(rows)

    # Zero padding of N / H is exact: zero rows / zero images contribute 0 to the sum.
    n_pad = -(-N // b_tile) * b_tile
    h_pad = -(-H // tile_h) * tile_h
    if n_pad != N or h_pad != H:
        x = jnp.pad(x, ((0, n_pad - N), (0, 0), (0, h_pad - H), (0, 0)))

    n_bt = n_pad // b_tile
    n_ht = h_pad // tile_h

    partials = pl.pallas_call(
        r_smooth_kernel,
        out_shape=jax.ShapeDtypeStruct((n_bt, 1, 1), jnp.float32),
        grid_spec=pltpu.PrefetchScalarGridSpec(
            num_scalar_prefetch=0,
            grid=(n_bt, n_ht),
            in_specs=[pl.BlockSpec((b_tile, 3, tile_h, W),
                                   lambda bt, ht: (bt, 0, ht, 0))],
            out_specs=pl.BlockSpec((1, 1, 1), lambda bt, ht: (bt, 0, 0)),
            scratch_shapes=[pltpu.VMEM((tile_h, W), jnp.float32),    # acc slab
                            pltpu.VMEM((b_tile, 1, W), jnp.float32)],  # carried row
        ),
        compiler_params=pltpu.CompilerParams(
            dimension_semantics=("parallel", "arbitrary"),
            vmem_limit_bytes=30 * 1024 * 1024),
    )(x)

    # mean over the (N, 1, H+1, W+1) conv output (original, unpadded N / H / W).
    denom = jnp.float32(N * (H + 1) * (W + 1))
    return jnp.sum(partials) / denom


def _reference_loss(input_R):
    """Plain-JAX mirror of the PyTorch forward (for verification)."""
    x = input_R.astype(jnp.float32)
    w = jnp.array([0.299, 0.587, 0.114], jnp.float32)
    gray = jnp.tensordot(x, w, axes=([1], [0]))[:, None, :, :]      # (N,1,H,W)
    kx = jnp.array([[0.0, 0.0], [-1.0, 1.0]], jnp.float32).reshape(1, 1, 2, 2)
    ky = jnp.transpose(kx, (0, 1, 3, 2))
    dn = ("NCHW", "OIHW", "NCHW")
    gx = jnp.abs(jax.lax.conv_general_dilated(gray, kx, (1, 1),
                                              [(1, 1), (1, 1)],
                                              dimension_numbers=dn))
    gy = jnp.abs(jax.lax.conv_general_dilated(gray, ky, (1, 1),
                                              [(1, 1), (1, 1)],
                                              dimension_numbers=dn))
    return jnp.mean(gx + gy)


if __name__ == "__main__":
    # No learned parameters: RGB weights and the 2x2 stencils are fixed constants.
    key = jax.random.PRNGKey(0)

    # Test 1: small-image path (B_TILE batching, single H tile).
    x1 = jax.random.uniform(key, (2, 3, 16, 16), dtype=jnp.float32)
    loss1 = r_smooth_loss(x1)
    jax.block_until_ready(loss1)
    ref1 = _reference_loss(x1)
    assert jnp.allclose(loss1, ref1, atol=1e-5, rtol=1e-5), (loss1, ref1)

    # Test 2: force the H-tiled path (TILE_H=8, H padded 20->24, cross-tile carry,
    # one partial sum per image).
    x2 = jax.random.uniform(jax.random.PRNGKey(0), (2, 3, 20, 16), dtype=jnp.float32)
    loss2 = r_smooth_loss(x2, target_block_bytes=2048)
    jax.block_until_ready(loss2)
    ref2 = _reference_loss(x2)
    assert jnp.allclose(loss2, ref2, atol=1e-5, rtol=1e-5), (loss2, ref2)

    print("KERNEL_OK")
</pallas_src>

<mosaic_0001>
module attributes {stable_mosaic.version = 11 : i64} {
  func.func @r_smooth_kernel(%arg0: i32, %arg1: i32, %arg2: memref<2x3x16x16xf32, #tpu.memory_space<vmem>>, %arg3: memref<1x1x1xf32, #tpu.memory_space<vmem>>, %arg4: memref<16x16xf32, #tpu.memory_space<vmem>>, %arg5: memref<2x1x16xf32, #tpu.memory_space<vmem>>) attributes {dimension_semantics = [#tpu.dimension_semantics<parallel>, #tpu.dimension_semantics<arbitrary>], iteration_bounds = array<i64: 1, 1>, scalar_prefetch = 0 : i64, scratch_operands = 2 : i64, tpu.core_type = #tpu.core_type<tc>, window_params = [{transform_indices = @transform_0, window_bounds = array<i64: 2, 3, 16, 16>}, {transform_indices = @transform_1, window_bounds = array<i64: 1, 1, 1>}]} {
    %c0_i32 = arith.constant 0 : i32
    %0 = arith.cmpi eq, %arg1, %c0_i32 : i32
    %1 = arith.extui %0 : i1 to i32
    %c0_i32_0 = arith.constant 0 : i32
    %2 = arith.cmpi ne, %1, %c0_i32_0 : i32
    scf.if %2 {
      %cst_23 = arith.constant 0.000000e+00 : f32
      %53 = vector.broadcast %cst_23 : f32 to vector<16x16xf32>
      %c0_24 = arith.constant 0 : index
      %c0_25 = arith.constant 0 : index
      %54 = vector.load %arg4[%c0_24, %c0_25] : memref<16x16xf32, #tpu.memory_space<vmem>>, vector<16x16xf32>
      tpu.vector_store %arg4[%c0_24, %c0_25], %53 {strides = array<i32>} : memref<16x16xf32, #tpu.memory_space<vmem>>, vector<16x16xf32>,
      %cst_26 = arith.constant 0.000000e+00 : f32
      %55 = vector.broadcast %cst_26 : f32 to vector<2x1x16xf32>
      %c0_27 = arith.constant 0 : index
      %c0_28 = arith.constant 0 : index
      %c0_29 = arith.constant 0 : index
      %56 = vector.load %arg5[%c0_27, %c0_28, %c0_29] : memref<2x1x16xf32, #tpu.memory_space<vmem>>, vector<2x1x16xf32>
      tpu.vector_store %arg5[%c0_27, %c0_28, %c0_29], %55 {strides = array<i32>} : memref<2x1x16xf32, #tpu.memory_space<vmem>>, vector<2x1x16xf32>,
    } else {
    }
    %c0 = arith.constant 0 : index
    %c0_1 = arith.constant 0 : index
    %c0_2 = arith.constant 0 : index
    %c0_3 = arith.constant 0 : index
    %3 = vector.load %arg2[%c0, %c0_1, %c0_2, %c0_3] : memref<2x3x16x16xf32, #tpu.memory_space<vmem>>, vector<2x3x16x16xf32>
    %4 = vector.extract_strided_slice %3 {offsets = [0, 0, 0, 0], sizes = [2, 1, 16, 16], strides = [1, 1, 1, 1]} : vector<2x3x16x16xf32> to vector<2x1x16x16xf32>
    %5 = vector.shape_cast %4 : vector<2x1x16x16xf32> to vector<2x16x16xf32>
    %cst = arith.constant 2.990000e-01 : f32
    %6 = vector.broadcast %cst : f32 to vector<2x16x16xf32>
    %7 = arith.mulf %6, %5 : vector<2x16x16xf32>
    %8 = vector.extract_strided_slice %3 {offsets = [0, 1, 0, 0], sizes = [2, 1, 16, 16], strides = [1, 1, 1, 1]} : vector<2x3x16x16xf32> to vector<2x1x16x16xf32>
    %9 = vector.shape_cast %8 : vector<2x1x16x16xf32> to vector<2x16x16xf32>
    %cst_4 = arith.constant 5.870000e-01 : f32
    %10 = vector.broadcast %cst_4 : f32 to vector<2x16x16xf32>
    %11 = arith.mulf %10, %9 : vector<2x16x16xf32>
    %12 = arith.addf %7, %11 : vector<2x16x16xf32>
    %13 = vector.extract_strided_slice %3 {offsets = [0, 2, 0, 0], sizes = [2, 1, 16, 16], strides = [1, 1, 1, 1]} : vector<2x3x16x16xf32> to vector<2x1x16x16xf32>
    %14 = vector.shape_cast %13 : vector<2x1x16x16xf32> to vector<2x16x16xf32>
    %cst_5 = arith.constant 1.140000e-01 : f32
    %15 = vector.broadcast %cst_5 : f32 to vector<2x16x16xf32>
    %16 = arith.mulf %15, %14 : vector<2x16x16xf32>
    %17 = arith.addf %12, %16 : vector<2x16x16xf32>
    %18 = tpu.iota {dimensions = array<i32: 2>} : vector<2x16x16xi32>
    %19 = tpu.iota {dimensions = array<i32: 1>} : vector<2x16x16xi32>
    %20 = math.absf %17 : vector<2x16x16xf32>
    %cst_6 = arith.constant 0.000000e+00 : f32
    %21 = vector.broadcast %cst_6 : f32 to vector<2x16x1xf32>
    %22 = vector.extract_strided_slice %17 {offsets = [0, 0, 0], sizes = [2, 16, 15], strides = [1, 1, 1]} : vector<2x16x16xf32> to vector<2x16x15xf32>
    %23 = tpu.concatenate %21, %22 in 2 : vector<2x16x1xf32>, vector<2x16x15xf32> -> vector<2x16x16xf32>
    %24 = arith.subf %17, %23 : vector<2x16x16xf32>
    %25 = math.absf %24 : vector<2x16x16xf32>
    %c15_i32 = arith.constant 15 : i32
    %26 = vector.broadcast %c15_i32 : i32 to vector<2x16x16xi32>
    %27 = arith.cmpi eq, %18, %26 : vector<2x16x16xi32>
    %cst_7 = arith.constant 0.000000e+00 : f32
    %28 = vector.broadcast %cst_7 : f32 to vector<2x16x16xf32>
    %29 = arith.select %27, %20, %28 : vector<2x16x16xi1>, vector<2x16x16xf32>
    %30 = arith.addf %25, %29 : vector<2x16x16xf32>
    %c0_i32_8 = arith.constant 0 : i32
    %31 = arith.cmpi eq, %arg1, %c0_i32_8 : i32
    %c0_9 = arith.constant 0 : index
    %c0_10 = arith.constant 0 : index
    %c0_11 = arith.constant 0 : index
    %32 = vector.load %arg5[%c0_9, %c0_10, %c0_11] : memref<2x1x16xf32, #tpu.memory_space<vmem>>, vector<2x1x16xf32>
    %33 = vector.extract_strided_slice %17 {offsets = [0, 0, 0], sizes = [2, 15, 16], strides = [1, 1, 1]} : vector<2x16x16xf32> to vector<2x15x16xf32>
    %34 = tpu.concatenate %32, %33 in 1 : vector<2x1x16xf32>, vector<2x15x16xf32> -> vector<2x16x16xf32>
    %35 = arith.subf %17, %34 : vector<2x16x16xf32>
    %36 = math.absf %35 : vector<2x16x16xf32>
    %c15_i32_12 = arith.constant 15 : i32
    %37 = vector.broadcast %c15_i32_12 : i32 to vector<2x16x16xi32>
    %38 = arith.cmpi eq, %19, %37 : vector<2x16x16xi32>
    %39 = vector.broadcast %31 : i1 to vector<2x16x16xi1>
    %40 = arith.andi %39, %38 : vector<2x16x16xi1>
    %cst_13 = arith.constant 0.000000e+00 : f32
    %41 = vector.broadcast %cst_13 : f32 to vector<2x16x16xf32>
    %42 = arith.select %40, %20, %41 : vector<2x16x16xi1>, vector<2x16x16xf32>
    %43 = arith.addf %36, %42 : vector<2x16x16xf32>
    %44 = vector.extract_strided_slice %17 {offsets = [0, 15, 0], sizes = [2, 1, 16], strides = [1, 1, 1]} : vector<2x16x16xf32> to vector<2x1x16xf32>
    %c0_14 = arith.constant 0 : index
    %c0_15 = arith.constant 0 : index
    %c0_16 = arith.constant 0 : index
    %45 = vector.load %arg5[%c0_14, %c0_15, %c0_16] : memref<2x1x16xf32, #tpu.memory_space<vmem>>, vector<2x1x16xf32>
    tpu.vector_store %arg5[%c0_14, %c0_15, %c0_16], %44 {strides = array<i32>} : memref<2x1x16xf32, #tpu.memory_space<vmem>>, vector<2x1x16xf32>,
    %c0_17 = arith.constant 0 : index
    %c0_18 = arith.constant 0 : index
    %46 = vector.load %arg4[%c0_17, %c0_18] : memref<16x16xf32, #tpu.memory_space<vmem>>, vector<16x16xf32>
    %47 = arith.addf %30, %43 : vector<2x16x16xf32>
    %cst_19 = arith.constant dense<0.000000e+00> : vector<16x16xf32>
    %48 = vector.multi_reduction <add>, %47, %cst_19 [0] : vector<2x16x16xf32> to vector<16x16xf32>
    %49 = arith.addf %46, %48 : vector<16x16xf32>
    %c0_20 = arith.constant 0 : index
    %c0_21 = arith.constant 0 : index
    %50 = vector.load %arg4[%c0_20, %c0_21] : memref<16x16xf32, #tpu.memory_space<vmem>>, vector<16x16xf32>
    tpu.vector_store %arg4[%c0_20, %c0_21], %49 {strides = array<i32>} : memref<16x16xf32, #tpu.memory_space<vmem>>, vector<16x16xf32>,
    %51 = arith.extui %31 : i1 to i32
    %c0_i32_22 = arith.constant 0 : i32
    %52 = arith.cmpi ne, %51, %c0_i32_22 : i32
    scf.if %52 {
      %c0_23 = arith.constant 0 : index
      %c0_24 = arith.constant 0 : index
      %53 = vector.load %arg4[%c0_23, %c0_24] : memref<16x16xf32, #tpu.memory_space<vmem>>, vector<16x16xf32>
      %54 = vector.shape_cast %53 : vector<16x16xf32> to vector<1x16x16xf32>
      %cst_25 = arith.constant dense<0.000000e+00> : vector<1xf32>
      %55 = vector.multi_reduction <add>, %54, %cst_25 [1, 2] : vector<1x16x16xf32> to vector<1xf32>
      %56 = vector.shape_cast %55 : vector<1xf32> to vector<1x1x1xf32>
      %57 = vector.extract %56[0, 0, 0] : f32 from vector<1x1x1xf32>
      %58 = vector.broadcast %57 : f32 to vector<1x1xf32>
      %59 = vector.shape_cast %58 : vector<1x1xf32> to vector<1x1x1xf32>
      %c0_26 = arith.constant 0 : index
      %c0_27 = arith.constant 0 : index
      %c0_28 = arith.constant 0 : index
      %60 = vector.load %arg3[%c0_26, %c0_27, %c0_28] : memref<1x1x1xf32, #tpu.memory_space<vmem>>, vector<1x1x1xf32>
      tpu.vector_store %arg3[%c0_26, %c0_27, %c0_28], %59 {strides = array<i32>} : memref<1x1x1xf32, #tpu.memory_space<vmem>>, vector<1x1x1xf32>,
    } else {
    }
    return
  }
  func.func @transform_0(%arg0: i32, %arg1: i32) -> (i32, i32, i32, i32) {
    %c0_i32 = arith.constant 0 : i32
    %c0_i32_0 = arith.constant 0 : i32
    %c0_i32_1 = arith.constant 0 : i32
    return %arg0, %c0_i32, %arg1, %c0_i32_0 : i32, i32, i32, i32
  }
  func.func @transform_1(%arg0: i32, %arg1: i32) -> (i32, i32, i32) {
    %c0_i32 = arith.constant 0 : i32
    %c0_i32_0 = arith.constant 0 : i32
    %c0_i32_1 = arith.constant 0 : i32
    return %arg0, %c0_i32, %c0_i32_0 : i32, i32, i32
  }
}

</mosaic_0001>

<llo_original>
// kernel: tpu_custom_call.1
$region0: #{tpu_custom_call.1}
  #allocation0 [shape = 'u32[]', space=smem, size = 0x4, offset = 0x4, fixed_abs, tag = 'smem constant byte address 0x4 - core index']
  #allocation1 [shape = 'u32[144,128]{1,0:T(1,128)}', space=vmem, size = 0x12000, scoped, tag = 'internal scratch']
  #allocation2 [shape = 'f32[16,16]{1,0:T(8,128)}', space=vmem, size = 0x2000, scoped, tag = 'scratch operand']
  #allocation3 [shape = 'f32[2,1,16]{2,1,0:T(1,128)}', space=vmem, size = 0x400, scoped, tag = 'scratch operand']
  %s0 = inlined_call_operand.hbm [shape: f32[2,3,16,16], index: 0, kind: input, shape index: {}]
  %s1 = inlined_call_operand.hbm [shape: f32[1,1,1], index: 1, kind: output, shape index: {}]
  %s2 = sld [smem:[#allocation0]]
  $region26: #{tpu_custom_call.1} parent=0
    _
  %s4 = ssub.s32 1, %s2
  %s5 = scalar_select 0, %s4, %s2
  $region1: #{tpu_custom_call.1} parent=0
    #allocation4 [shape = 'u8[49152]{0}', space=vmem, size = 0xc000, scoped, tag = 'input window, operand 0, single buffered']
    #allocation5 [shape = 's32[1]{0}', space=sflag, size = 0x4, scoped, tag = 'scoped memory for tpu_custom_call.1']
    #allocation6 [shape = 's32[1]{0}', space=sflag, size = 0x4, scoped, tag = 'scoped memory for tpu_custom_call.1']
    #allocation7 [shape = 'u8[512]{0}', space=vmem, size = 0x400, scoped, tag = 'output window, operand 0, single buffered']
    %6 = vsyncpa [#allocation5], 0
    %7 = vsyncpa [#allocation6], 0
    // Predicated region
    $region2: #{tpu_custom_call.1} parent=1 // pred_check
      _
    $region3: #{tpu_custom_call.1} parent=1 // pred_check_branch
      %9 = sbr.rel (0) target = $region5
    $region4: #{tpu_custom_call.1} parent=1 // pred_region
      %s11 = ssub.s32 1536, 1536
      %12 = vsyncadd [#allocation5], %s11
      %s13 = sshll.u32 [#allocation4], 4
      %s14 = int_to_ptr.vmem [resolvable:$true] %s13
      %19 = dma.hbm_to_vmem [thread:$0]  %s0, 1536, %s14, [#allocation5], 128, 128, 8
    $region5: #{tpu_custom_call.1} parent=1 // pred_fallthru
      _
    // Predicated region
    $region6: #{tpu_custom_call.1} parent=1 // pred_check
      _
    $region7: #{tpu_custom_call.1} parent=1 // pred_check_branch
      %21 = sbr.rel (0) target = $region9
    $region8: #{tpu_custom_call.1} parent=1 // pred_region
      %22 = dma.done [#allocation5], 1536
    $region9: #{tpu_custom_call.1} parent=1 // pred_fallthru
      _
    %p23 = scmp.eq.s32.totalorder 0, 0
    // Predicated region
    $region10: #{tpu_custom_call.1} parent=1 // pred_check
      %p24 = pneg %p23
    $region11: #{tpu_custom_call.1} parent=1 // pred_check_branch
      %26 = sbr.rel (%p24) target = $region13
    $region12: #{tpu_custom_call.1} parent=1 // pred_region
      %vm27 = vcmask 130048
      %28 = vst.msk [vmem:[#allocation2] sm:$0xff] %vm27, 0.0
      %29 = vst.msk [vmem:[#allocation2 + $0x8] sm:$0xff] %vm27, 0.0
      %vm30 = vcmask 122880
      %31 = vst.msk [vmem:[#allocation3] sm:$0x1] %vm30, 0.0
      %32 = vst.msk [vmem:[#allocation3 + $0x1] sm:$0x1] %vm30, 0.0
    $region13: #{tpu_custom_call.1} parent=1 // pred_fallthru
      _
    %v33 = vld [vmem:[#allocation4] sm:$0xff]
    %v34 = vld [vmem:[#allocation4 + $0x8] sm:$0xff]
    %v35 = vld [vmem:[#allocation4 + $0x10] sm:$0xff]
    %v36 = vld [vmem:[#allocation4 + $0x18] sm:$0xff]
    %v37 = vld [vmem:[#allocation4 + $0x20] sm:$0xff]
    %v38 = vld [vmem:[#allocation4 + $0x28] sm:$0xff]
    %v39 = vld [vmem:[#allocation4 + $0x30] sm:$0xff]
    %v40 = vld [vmem:[#allocation4 + $0x38] sm:$0xff]
    %v41 = vld [vmem:[#allocation4 + $0x40] sm:$0xff]
    %v42 = vld [vmem:[#allocation4 + $0x48] sm:$0xff]
    %v43 = vld [vmem:[#allocation4 + $0x50] sm:$0xff]
    %v44 = vld [vmem:[#allocation4 + $0x58] sm:$0xff]
    %v45 = vmul.f32 %v33, 0.299
    %v46 = vmul.f32 %v34, 0.299
    %v47 = vmul.f32 %v39, 0.299
    %v48 = vmul.f32 %v40, 0.299
    %v49 = vmul.f32 %v35, 0.587
    %v50 = vmul.f32 %v36, 0.587
    %v51 = vmul.f32 %v41, 0.587
    %v52 = vmul.f32 %v42, 0.587
    %v53 = vadd.f32 %v45, %v49
    %v54 = vadd.f32 %v46, %v50
    %v55 = vadd.f32 %v47, %v51
    %v56 = vadd.f32 %v48, %v52
    %v57 = vmul.f32 %v37, 0.114
    %v58 = vmul.f32 %v38, 0.114
    %v59 = vmul.f32 %v43, 0.114
    %v60 = vmul.f32 %v44, 0.114
    %v61 = vadd.f32 %v53, %v57
    %v62 = vadd.f32 %v54, %v58
    %v63 = vadd.f32 %v55, %v59
    %v64 = vadd.f32 %v56, %v60
    %v65 = vlaneseq
    %v66 = vand.u32 %v65, 127
    %v67 = vlaneseq
    %v68 = vshrl.u32 %v67, 7
    %v69 = vadd.s32 %v68, 8
    %v70 = vand.u32 2147483647, %v61
    %v71 = vand.u32 2147483647, %v62
    %v72 = vand.u32 2147483647, %v63
    %v73 = vand.u32 2147483647, %v64
    %78 = vrot.lane.b32.xlu0 %v61, 1
    %v79 = vpop.permute.xlu0 %78
    %80 = vrot.lane.b32.xlu0 %v62, 1
    %v81 = vpop.permute.xlu0 %80
    %82 = vrot.lane.b32.xlu0 %v63, 1
    %v83 = vpop.permute.xlu0 %82
    %84 = vrot.lane.b32.xlu0 %v64, 1
    %v85 = vpop.permute.xlu0 %84
    %vm90 = vcmask 7168
    %v91 = vsel %vm90, 0.0, %v79
    %v92 = vsel %vm90, 0.0, %v81
    %v93 = vsel %vm90, 0.0, %v83
    %v94 = vsel %vm90, 0.0, %v85
    %v95 = vsub.f32 %v61, %v91
    %v96 = vsub.f32 %v62, %v92
    %v97 = vsub.f32 %v63, %v93
    %v98 = vsub.f32 %v64, %v94
    %v99 = vand.u32 2147483647, %v95
    %v100 = vand.u32 2147483647, %v96
    %v101 = vand.u32 2147483647, %v97
    %v102 = vand.u32 2147483647, %v98
    %vm103 = vcmp.eq.s32.totalorder %v66, 15
    %v104 = vsel %vm103, %v70, 0.0
    %v105 = vsel %vm103, %v71, 0.0
    %v106 = vsel %vm103, %v72, 0.0
    %v107 = vsel %vm103, %v73, 0.0
    %v108 = vadd.f32 %v99, %v104
    %v109 = vadd.f32 %v100, %v105
    %v110 = vadd.f32 %v101, %v106
    %v111 = vadd.f32 %v102, %v107
    %v112 = vld [vmem:[#allocation3] sm:$0x1]
    %v113 = vld [vmem:[#allocation3 + $0x1] sm:$0x1]
    %vm114 = vcmask 1040384
    %v115 = vrot.slane %v61, 7
    %v116 = vrot.slane %v62, 7
    %v117 = vsel %vm114, %v115, %v116
    %v118 = vrot.slane %v63, 7
    %v119 = vrot.slane %v64, 7
    %v120 = vsel %vm114, %v118, %v119
    %v125 = vsel %vm114, %v112, %v115
    %v126 = vsel %vm114, %v113, %v118
    %v127 = vsub.f32 %v61, %v125
    %v128 = vsub.f32 %v62, %v117
    %v129 = vsub.f32 %v63, %v126
    %v130 = vsub.f32 %v64, %v120
    %v131 = vand.u32 2147483647, %v127
    %v132 = vand.u32 2147483647, %v128
    %v133 = vand.u32 2147483647, %v129
    %v134 = vand.u32 2147483647, %v130
    %vm135 = vcmp.eq.s32.totalorder %v68, 15
    %vm136 = vcmp.eq.s32.totalorder %v69, 15
    %s137 = scalar_select %p23, 1, 0
    %v138 = vstv %s137
    %vm139 = vcmp.eq.s32.totalorder %v138, 1
    %vm140 = vmand %vm139, %vm135
    %vm141 = vmand %vm139, %vm136
    %v142 = vsel %vm140, %v70, 0.0
    %v143 = vsel %vm141, %v71, 0.0
    %v144 = vsel %vm140, %v72, 0.0
    %v145 = vsel %vm141, %v73, 0.0
    %v146 = vadd.f32 %v131, %v142
    %v147 = vadd.f32 %v132, %v143
    %v148 = vadd.f32 %v133, %v144
    %v149 = vadd.f32 %v134, %v145
    %vm150 = vcmask 130055
    %151 = vst.msk [vmem:[#allocation3 - $0x7] sm:$0x80] %vm150, %v62
    %152 = vst.msk [vmem:[#allocation3 - $0x6] sm:$0x80] %vm150, %v64
    %v153 = vld [vmem:[#allocation2] sm:$0xff]
    %v154 = vld [vmem:[#allocation2 + $0x8] sm:$0xff]
    %v155 = vadd.f32 %v108, %v146
    %v156 = vadd.f32 %v109, %v147
    %v157 = vadd.f32 %v110, %v148
    %v158 = vadd.f32 %v111, %v149
    %vm159 = vcmask 130048
    %v160 = vsel %vm159, %v155, 0.0
    %v161 = vsel %vm159, %v157, 0.0
    %v162 = vadd.f32 %v160, %v161
    %v163 = vsel %vm159, %v156, 0.0
    %v164 = vsel %vm159, %v158, 0.0
    %v165 = vadd.f32 %v163, %v164
    %v166 = vadd.f32 %v153, %v162
    %v167 = vadd.f32 %v154, %v165
    %168 = vst.msk [vmem:[#allocation2] sm:$0xff] %vm159, %v166
    %169 = vst.msk [vmem:[#allocation2 + $0x8] sm:$0xff] %vm159, %v167
    // Predicated region
    $region14: #{tpu_custom_call.1} parent=1 // pred_check
      %p170 = pneg %p23
    $region15: #{tpu_custom_call.1} parent=1 // pred_check_branch
      %172 = sbr.rel (%p170) target = $region17
    $region16: #{tpu_custom_call.1} parent=1 // pred_region
      %v173 = vld [vmem:[#allocation2] sm:$0xff]
      %v174 = vld [vmem:[#allocation2 + $0x8] sm:$0xff]
      %v175 = vsel %vm159, %v173, 0.0
      %v176 = vsel %vm159, %v174, 0.0
      %v177 = vadd.f32 %v175, %v176
      %178 = vadd.xlane.f32.xlu0 %v177
      %v179 = vpop.xlane.xlu0 %178
      %v180 = vrot.slane %v179, 4
      %v181 = vadd.f32 %v179, %v180
      %v182 = vrot.slane %v181, 2
      %v183 = vadd.f32 %v181, %v182
      %v184 = vrot.slane %v183, 1
      %v185 = vadd.f32 %v183, %v184
      %s186 = vtos %v185
      %v187 = vstv %s186
      %vm188 = vcmask 0
      %189 = vst.msk [vmem:[#allocation7] sm:$0x1] %vm188, %v187
    $region17: #{tpu_custom_call.1} parent=1 // pred_fallthru
      _
    // Predicated region
    $region18: #{tpu_custom_call.1} parent=1 // pred_check
      _
    $region19: #{tpu_custom_call.1} parent=1 // pred_check_branch
      %191 = sbr.rel (0) target = $region21
    $region20: #{tpu_custom_call.1} parent=1 // pred_region
      %s193 = ssub.s32 16, 16
      %194 = vsyncadd [#allocation6], %s193
      %s196 = sshll.u32 [#allocation7], 4
      %s197 = int_to_ptr.vmem [resolvable:$true] %s196
      %199 = dma.vmem_to_hbm [thread:$0]  %s197, 16, %s1, [#allocation6]
    $region21: #{tpu_custom_call.1} parent=1 // pred_fallthru
      _
    // Predicated region
    $region22: #{tpu_custom_call.1} parent=1 // pred_check
      _
    $region23: #{tpu_custom_call.1} parent=1 // pred_check_branch
      %201 = sbr.rel (0) target = $region25
    $region24: #{tpu_custom_call.1} parent=1 // pred_region
      %202 = dma.done [#allocation6], 16
    $region25: #{tpu_custom_call.1} parent=1 // pred_fallthru
      _
    %203 = vsyncpa [#allocation5], 1
    %204 = vsyncpa [#allocation6], 1

</llo_original>
